<compile_context>
chip_gen: v6e
topology: v6e:2x2x1
jax: 0.10.0
libtpu: 0.0.40
codegen_flags: <defaults>
</compile_context>

<pallas_src>
import functools

import jax
import jax.numpy as jnp
from jax.experimental import pallas as pl
from jax.experimental.pallas import tpu as pltpu


def _neu_process_encoder_kernel(
    x_ref,              # (tb, ts, Din)       bf16
    w1_ref, b1_ref,     # (Din, H) bf16,      (1, H) f32
    w2_ref, b2_ref,     # (H, Dout) bf16,     (1, Dout) f32
    wz_ref, bz_ref,     # (Dout, H) bf16,     (1, H) f32      [z1_dim -> z2_dim]
    wh_ref, bh_ref,     # (H, 2*Dzp) bf16,    (1, 2*Dzp) f32  fused, lane-padded head
    eps_ref,            # (tb, Dzp) f32
    z_ref,              # out: (tb, Dzp) f32
    acc_ref,            # scratch: (tb, H) f32 — running set-sum of ReLU(x W1 + b1)
    *, inv_s, dz_pad,
):
    j = pl.program_id(1)

    @pl.when(j == 0)
    def _init():
        acc_ref[...] = jnp.zeros_like(acc_ref)

    tb, ts, din = x_ref.shape
    # Merge leading dims only (lane dim untouched, free relayout for 16-aligned
    # bf16 rows); operands are already bf16.
    x2 = x_ref[...].reshape(tb * ts, din)

    # ---- layer 1: Linear -> Dropout(eval: identity) -> ReLU.
    # Layer 2 (W2, b2) is hoisted out of the set loop (linearity of mean).
    h = jnp.dot(x2, w1_ref[...], preferred_element_type=jnp.float32) + b1_ref[...]
    h = jnp.maximum(h, 0.0)

    # ---- aggregate: accumulate the set-sum of h for this tile.
    acc_ref[...] += jnp.sum(h.reshape(tb, ts, -1), axis=1)

    @pl.when(j == pl.num_programs(1) - 1)
    def _finalize():
        mean_h = (acc_ref[...] * inv_s).astype(jnp.bfloat16)          # mean = sum * (1/S)
        # ---- hoisted second linear of input_to_hidden (applied once on the mean)
        agg = jnp.dot(mean_h, w2_ref[...],
                      preferred_element_type=jnp.float32) + b2_ref[...]
        # ---- z_encode with fused, lane-padded mu|logsigma head
        hz = jnp.dot(agg.astype(jnp.bfloat16), wz_ref[...],
                     preferred_element_type=jnp.float32) + bz_ref[...]
        hz = jnp.maximum(hz, 0.0)
        head = jnp.dot(hz.astype(jnp.bfloat16), wh_ref[...],
                       preferred_element_type=jnp.float32) + bh_ref[...]
        mu = head[:, :dz_pad]          # slices are at 128-lane boundaries
        log_sigma = head[:, dz_pad:]
        z_ref[...] = eps_ref[...] * jnp.exp(0.5 * log_sigma) + mu


def neu_process_encoder(x, params, eps, *, tb=None, ts=None):
    """x: (B, S, Din) f32, eps: (B, Dz) f32 standard-normal sample -> z: (B, Dz)."""
    B, S, Din = x.shape
    H = params["w1"].shape[1]
    Dout = params["w2"].shape[1]
    Dz = params["wmu"].shape[1]
    # z_to_hidden consumes the aggregated embedding, so (like the PyTorch
    # defaults) this requires output_size == input_size.
    assert params["wz"].shape[0] == Dout

    # ---- tile sizes ------------------------------------------------------
    # Set axis: process the whole set per step (collapse the reduction grid)
    # unless the caller re-introduces set tiling; keep ts a multiple of 16
    # (bf16 packed sublanes) if you do.
    if ts is None:
        ts = S
    # Batch axis: keep >= 2 batch tiles so the "parallel" axis can split
    # across v7x's 2 TensorCores, while keeping tb a multiple of 8 (output
    # block sublane rule) or the full batch.
    if tb is None:
        if B % 16 == 0:
            tb = B // 2
        elif B % 8 == 0:
            tb = 8
        else:
            tb = B
    assert B % tb == 0 and S % ts == 0

    # ---- lane-dense fused head (mu | logsigma), zero-padded to 128 lanes each
    Dz_pad = ((Dz + 127) // 128) * 128
    w_head = jnp.zeros((H, 2 * Dz_pad), jnp.float32)
    w_head = w_head.at[:, :Dz].set(params["wmu"])
    w_head = w_head.at[:, Dz_pad:Dz_pad + Dz].set(params["wls"])
    b_head = jnp.zeros((1, 2 * Dz_pad), jnp.float32)
    b_head = b_head.at[:, :Dz].set(params["bmu"])
    b_head = b_head.at[:, Dz_pad:Dz_pad + Dz].set(params["bls"])
    eps_pad = jnp.zeros((B, Dz_pad), jnp.float32).at[:, :Dz].set(eps)

    # ---- bf16 MXU operands, cast ONCE in the wrapper; f32 accumulation and
    # f32 bias/ReLU/exp inside the kernel.
    bf16 = jnp.bfloat16
    x_bf = x.astype(bf16)
    w1 = params["w1"].astype(bf16)
    w2 = params["w2"].astype(bf16)
    wz = params["wz"].astype(bf16)
    wh = w_head.astype(bf16)

    def resident(arr):
        # Whole array resident in VMEM across the grid (constant index map).
        # TODO(synk): at non-toy weight sizes add pipeline_mode=pl.Buffered(1)
        # here to halve the resident-weight VMEM footprint.
        return pl.BlockSpec(arr.shape, lambda i, j: (0,) * arr.ndim)

    grid = (B // tb, S // ts)
    kernel = functools.partial(_neu_process_encoder_kernel,
                               inv_s=1.0 / S, dz_pad=Dz_pad)

    z_pad = pl.pallas_call(
        kernel,
        out_shape=jax.ShapeDtypeStruct((B, Dz_pad), jnp.float32),
        grid_spec=pltpu.PrefetchScalarGridSpec(
            num_scalar_prefetch=0,
            grid=grid,
            in_specs=[
                pl.BlockSpec((tb, ts, Din), lambda i, j: (i, j, 0)),
                resident(w1), resident(params["b1"]),
                resident(w2), resident(params["b2"]),
                resident(wz), resident(params["bz"]),
                resident(wh), resident(b_head),
                pl.BlockSpec((tb, Dz_pad), lambda i, j: (i, 0)),
            ],
            out_specs=pl.BlockSpec((tb, Dz_pad), lambda i, j: (i, 0)),
            scratch_shapes=[pltpu.VMEM((tb, H), jnp.float32)],
        ),
        compiler_params=pltpu.CompilerParams(
            dimension_semantics=("parallel", "arbitrary"),
            # Raises v5e's 16 MiB scoped-VMEM default; safely within v7x's
            # 64 MiB physical VMEM.  Raise further when tiles grow.
            vmem_limit_bytes=32 * 1024 * 1024),
    )(
        x_bf,
        w1, params["b1"],
        w2, params["b2"],
        wz, params["bz"],
        wh, b_head,
        eps_pad,
    )
    return z_pad[:, :Dz]


def init_params(key, input_size, hidden_size, output_size):
    """Deterministic PyTorch-Linear-style init: U(-1/sqrt(fan_in), 1/sqrt(fan_in)).
    Weights stored as (in_features, out_features) for x @ W."""
    def linear(k, fan_in, fan_out):
        kw, kb = jax.random.split(k)
        bound = 1.0 / (fan_in ** 0.5)
        w = jax.random.uniform(kw, (fan_in, fan_out), jnp.float32, -bound, bound)
        b = jax.random.uniform(kb, (1, fan_out), jnp.float32, -bound, bound)
        return w, b

    k1, k2, k3, k4, k5 = jax.random.split(key, 5)
    w1, b1 = linear(k1, input_size, hidden_size)     # input_to_hidden[0]
    w2, b2 = linear(k2, hidden_size, output_size)    # input_to_hidden[3]
    wz, bz = linear(k3, input_size, hidden_size)     # z_to_hidden (z1 -> z2)
    wmu, bmu = linear(k4, hidden_size, output_size)  # hidden_to_mu
    wls, bls = linear(k5, hidden_size, output_size)  # hidden_to_logsigma
    return dict(w1=w1, b1=b1, w2=w2, b2=b2, wz=wz, bz=bz,
                wmu=wmu, bmu=bmu, wls=wls, bls=bls)


if __name__ == "__main__":
    # Small shapes; grid is (2, 1): two batch tiles (v7x megacore), one set step.
    B, S, D = 16, 32, 32
    input_size = hidden_size = output_size = D

    root = jax.random.PRNGKey(0)
    k_x, k_p, k_eps = jax.random.split(root, 3)

    x = jax.random.normal(k_x, (B, S, input_size), jnp.float32)
    params = init_params(k_p, input_size, hidden_size, output_size)
    eps = jax.random.normal(k_eps, (B, output_size), jnp.float32)  # randn_like(std)

    z = neu_process_encoder(x, params, eps)
    z = jax.block_until_ready(z)

    # Pure-JAX f32 reference (same math, same eps).  The kernel feeds bf16
    # operands to the MXU (f32 accumulation), so compare at ~1e-2 scale.
    h = jnp.maximum(x.reshape(B * S, input_size) @ params["w1"] + params["b1"], 0.0)
    e = (h @ params["w2"] + params["b2"]).reshape(B, S, output_size)
    a = jnp.mean(e, axis=1)
    hz = jnp.maximum(a @ params["wz"] + params["bz"], 0.0)
    mu = hz @ params["wmu"] + params["bmu"]
    ls = hz @ params["wls"] + params["bls"]
    z_ref = eps * jnp.exp(0.5 * ls) + mu
    max_err = jnp.max(jnp.abs(z - z_ref))
    assert jnp.allclose(z, z_ref, atol=5e-2, rtol=5e-2), (
        f"mismatch vs JAX reference; max abs err = {max_err}")

    print("KERNEL_OK")
</pallas_src>

<mosaic_0001>
module attributes {stable_mosaic.version = 11 : i64} {
  func.func @_neu_process_encoder_kernel(%arg0: i32, %arg1: i32, %arg2: memref<8x32x32xbf16, #tpu.memory_space<vmem>>, %arg3: memref<32x32xbf16, #tpu.memory_space<vmem>>, %arg4: memref<1x32xf32, #tpu.memory_space<vmem>>, %arg5: memref<32x32xbf16, #tpu.memory_space<vmem>>, %arg6: memref<1x32xf32, #tpu.memory_space<vmem>>, %arg7: memref<32x32xbf16, #tpu.memory_space<vmem>>, %arg8: memref<1x32xf32, #tpu.memory_space<vmem>>, %arg9: memref<32x256xbf16, #tpu.memory_space<vmem>>, %arg10: memref<1x256xf32, #tpu.memory_space<vmem>>, %arg11: memref<8x128xf32, #tpu.memory_space<vmem>>, %arg12: memref<8x128xf32, #tpu.memory_space<vmem>>, %arg13: memref<8x32xf32, #tpu.memory_space<vmem>>) attributes {dimension_semantics = [#tpu.dimension_semantics<parallel>, #tpu.dimension_semantics<arbitrary>], iteration_bounds = array<i64: 2, 1>, scalar_prefetch = 0 : i64, scratch_operands = 1 : i64, tpu.core_type = #tpu.core_type<tc>, window_params = [{transform_indices = @transform_0, window_bounds = array<i64: 8, 32, 32>}, {pipeline_mode = #tpu.pipeline_mode<synchronous>, transform_indices = @transform_1, window_bounds = array<i64: 32, 32>}, {pipeline_mode = #tpu.pipeline_mode<synchronous>, transform_indices = @transform_2, window_bounds = array<i64: 1, 32>}, {pipeline_mode = #tpu.pipeline_mode<synchronous>, transform_indices = @transform_3, window_bounds = array<i64: 32, 32>}, {pipeline_mode = #tpu.pipeline_mode<synchronous>, transform_indices = @transform_4, window_bounds = array<i64: 1, 32>}, {pipeline_mode = #tpu.pipeline_mode<synchronous>, transform_indices = @transform_5, window_bounds = array<i64: 32, 32>}, {pipeline_mode = #tpu.pipeline_mode<synchronous>, transform_indices = @transform_6, window_bounds = array<i64: 1, 32>}, {pipeline_mode = #tpu.pipeline_mode<synchronous>, transform_indices = @transform_7, window_bounds = array<i64: 32, 256>}, {pipeline_mode = #tpu.pipeline_mode<synchronous>, transform_indices = @transform_8, window_bounds = array<i64: 1, 256>}, {transform_indices = @transform_9, window_bounds = array<i64: 8, 128>}, {transform_indices = @transform_10, window_bounds = array<i64: 8, 128>}]} {
    %c0_i32 = arith.constant 0 : i32
    %0 = arith.cmpi eq, %arg1, %c0_i32 : i32
    %1 = arith.extui %0 : i1 to i32
    %c0_i32_0 = arith.constant 0 : i32
    %2 = arith.cmpi ne, %1, %c0_i32_0 : i32
    scf.if %2 {
      %cst_15 = arith.constant 0.000000e+00 : f32
      %20 = vector.broadcast %cst_15 : f32 to vector<8x32xf32>
      %c0_16 = arith.constant 0 : index
      %c0_17 = arith.constant 0 : index
      %21 = vector.load %arg13[%c0_16, %c0_17] : memref<8x32xf32, #tpu.memory_space<vmem>>, vector<8x32xf32>
      tpu.vector_store %arg13[%c0_16, %c0_17], %20 {strides = array<i32>} : memref<8x32xf32, #tpu.memory_space<vmem>>, vector<8x32xf32>,
    } else {
    }
    %c0 = arith.constant 0 : index
    %c0_1 = arith.constant 0 : index
    %c0_2 = arith.constant 0 : index
    %3 = vector.load %arg2[%c0, %c0_1, %c0_2] : memref<8x32x32xbf16, #tpu.memory_space<vmem>>, vector<8x32x32xbf16>
    %4 = vector.shape_cast %3 : vector<8x32x32xbf16> to vector<256x32xbf16>
    %c0_3 = arith.constant 0 : index
    %c0_4 = arith.constant 0 : index
    %5 = vector.load %arg3[%c0_3, %c0_4] : memref<32x32xbf16, #tpu.memory_space<vmem>>, vector<32x32xbf16>
    %cst = arith.constant dense<0.000000e+00> : vector<256x32xf32>
    %6 = tpu.matmul %4, %5, %cst {dimension_numbers = #tpu.dot_dimension_numbers<[1], [0], [0], [1], [0, 0, 1, 1], [], []>} : vector<256x32xbf16>, vector<32x32xbf16>, vector<256x32xf32> -> vector<256x32xf32>
    %c0_5 = arith.constant 0 : index
    %c0_6 = arith.constant 0 : index
    %7 = vector.load %arg4[%c0_5, %c0_6] : memref<1x32xf32, #tpu.memory_space<vmem>>, vector<1x32xf32>
    %8 = vector.broadcast %7 : vector<1x32xf32> to vector<256x32xf32>
    %9 = arith.addf %6, %8 : vector<256x32xf32>
    %cst_7 = arith.constant 0.000000e+00 : f32
    %10 = vector.broadcast %cst_7 : f32 to vector<256x32xf32>
    %11 = arith.maximumf %9, %10 : vector<256x32xf32>
    %c0_8 = arith.constant 0 : index
    %c0_9 = arith.constant 0 : index
    %12 = vector.load %arg13[%c0_8, %c0_9] : memref<8x32xf32, #tpu.memory_space<vmem>>, vector<8x32xf32>
    %13 = vector.shape_cast %11 : vector<256x32xf32> to vector<8x32x32xf32>
    %cst_10 = arith.constant dense<0.000000e+00> : vector<8x32xf32>
    %14 = vector.multi_reduction <add>, %13, %cst_10 [1] : vector<8x32x32xf32> to vector<8x32xf32>
    %15 = arith.addf %12, %14 : vector<8x32xf32>
    %c0_11 = arith.constant 0 : index
    %c0_12 = arith.constant 0 : index
    %16 = vector.load %arg13[%c0_11, %c0_12] : memref<8x32xf32, #tpu.memory_space<vmem>>, vector<8x32xf32>
    tpu.vector_store %arg13[%c0_11, %c0_12], %15 {strides = array<i32>} : memref<8x32xf32, #tpu.memory_space<vmem>>, vector<8x32xf32>,
    %c0_i32_13 = arith.constant 0 : i32
    %17 = arith.cmpi eq, %arg1, %c0_i32_13 : i32
    %18 = arith.extui %17 : i1 to i32
    %c0_i32_14 = arith.constant 0 : i32
    %19 = arith.cmpi ne, %18, %c0_i32_14 : i32
    scf.if %19 {
      %c0_15 = arith.constant 0 : index
      %c0_16 = arith.constant 0 : index
      %20 = vector.load %arg13[%c0_15, %c0_16] : memref<8x32xf32, #tpu.memory_space<vmem>>, vector<8x32xf32>
      %cst_17 = arith.constant 3.125000e-02 : f32
      %21 = vector.broadcast %cst_17 : f32 to vector<8x32xf32>
      %22 = arith.mulf %20, %21 : vector<8x32xf32>
      %23 = arith.truncf %22 : vector<8x32xf32> to vector<8x32xbf16>
      %c0_18 = arith.constant 0 : index
      %c0_19 = arith.constant 0 : index
      %24 = vector.load %arg5[%c0_18, %c0_19] : memref<32x32xbf16, #tpu.memory_space<vmem>>, vector<32x32xbf16>
      %cst_20 = arith.constant dense<0.000000e+00> : vector<8x32xf32>
      %25 = tpu.matmul %23, %24, %cst_20 {dimension_numbers = #tpu.dot_dimension_numbers<[1], [0], [0], [1], [0, 0, 1, 1], [], []>} : vector<8x32xbf16>, vector<32x32xbf16>, vector<8x32xf32> -> vector<8x32xf32>
      %c0_21 = arith.constant 0 : index
      %c0_22 = arith.constant 0 : index
      %26 = vector.load %arg6[%c0_21, %c0_22] : memref<1x32xf32, #tpu.memory_space<vmem>>, vector<1x32xf32>
      %27 = vector.broadcast %26 : vector<1x32xf32> to vector<8x32xf32>
      %28 = arith.addf %25, %27 : vector<8x32xf32>
      %29 = arith.truncf %28 : vector<8x32xf32> to vector<8x32xbf16>
      %c0_23 = arith.constant 0 : index
      %c0_24 = arith.constant 0 : index
      %30 = vector.load %arg7[%c0_23, %c0_24] : memref<32x32xbf16, #tpu.memory_space<vmem>>, vector<32x32xbf16>
      %cst_25 = arith.constant dense<0.000000e+00> : vector<8x32xf32>
      %31 = tpu.matmul %29, %30, %cst_25 {dimension_numbers = #tpu.dot_dimension_numbers<[1], [0], [0], [1], [0, 0, 1, 1], [], []>} : vector<8x32xbf16>, vector<32x32xbf16>, vector<8x32xf32> -> vector<8x32xf32>
      %c0_26 = arith.constant 0 : index
      %c0_27 = arith.constant 0 : index
      %32 = vector.load %arg8[%c0_26, %c0_27] : memref<1x32xf32, #tpu.memory_space<vmem>>, vector<1x32xf32>
      %33 = vector.broadcast %32 : vector<1x32xf32> to vector<8x32xf32>
      %34 = arith.addf %31, %33 : vector<8x32xf32>
      %cst_28 = arith.constant 0.000000e+00 : f32
      %35 = vector.broadcast %cst_28 : f32 to vector<8x32xf32>
      %36 = arith.maximumf %34, %35 : vector<8x32xf32>
      %37 = arith.truncf %36 : vector<8x32xf32> to vector<8x32xbf16>
      %c0_29 = arith.constant 0 : index
      %c0_30 = arith.constant 0 : index
      %38 = vector.load %arg9[%c0_29, %c0_30] : memref<32x256xbf16, #tpu.memory_space<vmem>>, vector<32x256xbf16>
      %cst_31 = arith.constant dense<0.000000e+00> : vector<8x256xf32>
      %39 = tpu.matmul %37, %38, %cst_31 {dimension_numbers = #tpu.dot_dimension_numbers<[1], [0], [0], [1], [0, 0, 1, 1], [], []>} : vector<8x32xbf16>, vector<32x256xbf16>, vector<8x256xf32> -> vector<8x256xf32>
      %c0_32 = arith.constant 0 : index
      %c0_33 = arith.constant 0 : index
      %40 = vector.load %arg10[%c0_32, %c0_33] : memref<1x256xf32, #tpu.memory_space<vmem>>, vector<1x256xf32>
      %41 = vector.broadcast %40 : vector<1x256xf32> to vector<8x256xf32>
      %42 = arith.addf %39, %41 : vector<8x256xf32>
      %43 = vector.extract_strided_slice %42 {offsets = [0, 0], sizes = [8, 128], strides = [1, 1]} : vector<8x256xf32> to vector<8x128xf32>
      %44 = vector.extract_strided_slice %42 {offsets = [0, 128], sizes = [8, 128], strides = [1, 1]} : vector<8x256xf32> to vector<8x128xf32>
      %c0_34 = arith.constant 0 : index
      %c0_35 = arith.constant 0 : index
      %45 = vector.load %arg11[%c0_34, %c0_35] : memref<8x128xf32, #tpu.memory_space<vmem>>, vector<8x128xf32>
      %cst_36 = arith.constant 5.000000e-01 : f32
      %46 = vector.broadcast %cst_36 : f32 to vector<8x128xf32>
      %47 = arith.mulf %46, %44 : vector<8x128xf32>
      %48 = math.exp %47 : vector<8x128xf32>
      %49 = arith.mulf %45, %48 : vector<8x128xf32>
      %50 = arith.addf %49, %43 : vector<8x128xf32>
      %c0_37 = arith.constant 0 : index
      %c0_38 = arith.constant 0 : index
      %51 = vector.load %arg12[%c0_37, %c0_38] : memref<8x128xf32, #tpu.memory_space<vmem>>, vector<8x128xf32>
      tpu.vector_store %arg12[%c0_37, %c0_38], %50 {strides = array<i32>} : memref<8x128xf32, #tpu.memory_space<vmem>>, vector<8x128xf32>,
    } else {
    }
    return
  }
  func.func @transform_0(%arg0: i32, %arg1: i32) -> (i32, i32, i32) {
    %c0_i32 = arith.constant 0 : i32
    %c0_i32_0 = arith.constant 0 : i32
    return %arg0, %arg1, %c0_i32 : i32, i32, i32
  }
  func.func @transform_1(%arg0: i32, %arg1: i32) -> (i32, i32) {
    %c0_i32 = arith.constant 0 : i32
    %c0_i32_0 = arith.constant 0 : i32
    %c0_i32_1 = arith.constant 0 : i32
    return %c0_i32, %c0_i32_0 : i32, i32
  }
  func.func @transform_2(%arg0: i32, %arg1: i32) -> (i32, i32) {
    %c0_i32 = arith.constant 0 : i32
    %c0_i32_0 = arith.constant 0 : i32
    %c0_i32_1 = arith.constant 0 : i32
    return %c0_i32, %c0_i32_0 : i32, i32
  }
  func.func @transform_3(%arg0: i32, %arg1: i32) -> (i32, i32) {
    %c0_i32 = arith.constant 0 : i32
    %c0_i32_0 = arith.constant 0 : i32
    %c0_i32_1 = arith.constant 0 : i32
    return %c0_i32, %c0_i32_0 : i32, i32
  }
  func.func @transform_4(%arg0: i32, %arg1: i32) -> (i32, i32) {
    %c0_i32 = arith.constant 0 : i32
    %c0_i32_0 = arith.constant 0 : i32
    %c0_i32_1 = arith.constant 0 : i32
    return %c0_i32, %c0_i32_0 : i32, i32
  }
  func.func @transform_5(%arg0: i32, %arg1: i32) -> (i32, i32) {
    %c0_i32 = arith.constant 0 : i32
    %c0_i32_0 = arith.constant 0 : i32
    %c0_i32_1 = arith.constant 0 : i32
    return %c0_i32, %c0_i32_0 : i32, i32
  }
  func.func @transform_6(%arg0: i32, %arg1: i32) -> (i32, i32) {
    %c0_i32 = arith.constant 0 : i32
    %c0_i32_0 = arith.constant 0 : i32
    %c0_i32_1 = arith.constant 0 : i32
    return %c0_i32, %c0_i32_0 : i32, i32
  }
  func.func @transform_7(%arg0: i32, %arg1: i32) -> (i32, i32) {
    %c0_i32 = arith.constant 0 : i32
    %c0_i32_0 = arith.constant 0 : i32
    %c0_i32_1 = arith.constant 0 : i32
    return %c0_i32, %c0_i32_0 : i32, i32
  }
  func.func @transform_8(%arg0: i32, %arg1: i32) -> (i32, i32) {
    %c0_i32 = arith.constant 0 : i32
    %c0_i32_0 = arith.constant 0 : i32
    %c0_i32_1 = arith.constant 0 : i32
    return %c0_i32, %c0_i32_0 : i32, i32
  }
  func.func @transform_9(%arg0: i32, %arg1: i32) -> (i32, i32) {
    %c0_i32 = arith.constant 0 : i32
    %c0_i32_0 = arith.constant 0 : i32
    return %arg0, %c0_i32 : i32, i32
  }
  func.func @transform_10(%arg0: i32, %arg1: i32) -> (i32, i32) {
    %c0_i32 = arith.constant 0 : i32
    %c0_i32_0 = arith.constant 0 : i32
    return %arg0, %c0_i32 : i32, i32
  }
}

</mosaic_0001>

<llo_original>
// kernel: tpu_custom_call.1
$region0: #{tpu_custom_call.1}
  #allocation0 [shape = 'u32[]', space=smem, size = 0x4, offset = 0x4, fixed_abs, tag = 'smem constant byte address 0x4 - core index']
  #allocation1 [shape = 'u32[144,128]{1,0:T(1,128)}', space=vmem, size = 0x12000, scoped, tag = 'internal scratch']
  #allocation2 [shape = 'f32[8,32]{1,0:T(8,128)}', space=vmem, size = 0x1000, scoped, tag = 'scratch operand']
  %s0 = inlined_call_operand.hbm [shape: bf16[16,32,32], index: 0, kind: input, shape index: {}]
  %s1 = inlined_call_operand.hbm [shape: bf16[32,32], index: 1, kind: input, shape index: {}]
  %s2 = inlined_call_operand.hbm [shape: f32[1,32], index: 2, kind: input, shape index: {}]
  %s3 = inlined_call_operand.hbm [shape: bf16[32,32], index: 3, kind: input, shape index: {}]
  %s4 = inlined_call_operand.hbm [shape: f32[1,32], index: 4, kind: input, shape index: {}]
  %s5 = inlined_call_operand.hbm [shape: bf16[32,32], index: 5, kind: input, shape index: {}]
  %s6 = inlined_call_operand.hbm [shape: f32[1,32], index: 6, kind: input, shape index: {}]
  %s7 = inlined_call_operand.hbm [shape: bf16[32,256], index: 7, kind: input, shape index: {}]
  %s8 = inlined_call_operand.hbm [shape: f32[1,256], index: 8, kind: input, shape index: {}]
  %s9 = inlined_call_operand.vmem [shape: f32[16,128], index: 9, kind: input, shape index: {}]
  %s10 = inlined_call_operand.hbm [shape: f32[16,128], index: 10, kind: output, shape index: {}]
  %s11 = sld [smem:[#allocation0]]
  $region117: #{tpu_custom_call.1} parent=0
    _
  %s13 = ssub.s32 1, %s11
  %s14 = scalar_select 0, %s13, %s11
  $region1: #{tpu_custom_call.1} parent=0
    #allocation3 [shape = 'u8[131072]{0}', space=vmem, size = 0x20000, scoped, tag = 'input window, operand 0']
    #allocation4 [shape = 's32[2]{0}', space=sflag, size = 0x8, scoped, tag = 'scoped memory for tpu_custom_call.1']
    #allocation5 [shape = 's32[2]{0}', space=sflag, size = 0x8, scoped, tag = 'scoped memory for tpu_custom_call.1']
    #allocation6 [shape = 'u8[8192]{0}', space=vmem, size = 0x2000, scoped, tag = 'input window, operand 1, single buffered']
    #allocation7 [shape = 's32[1]{0}', space=sflag, size = 0x4, scoped, tag = 'scoped memory for tpu_custom_call.1']
    #allocation8 [shape = 'u8[512]{0}', space=vmem, size = 0x400, scoped, tag = 'input window, operand 2, single buffered']
    #allocation9 [shape = 'u8[8192]{0}', space=vmem, size = 0x2000, scoped, tag = 'input window, operand 3, single buffered']
    #allocation10 [shape = 's32[1]{0}', space=sflag, size = 0x4, scoped, tag = 'scoped memory for tpu_custom_call.1']
    #allocation11 [shape = 'u8[512]{0}', space=vmem, size = 0x400, scoped, tag = 'input window, operand 4, single buffered']
    #allocation12 [shape = 'u8[8192]{0}', space=vmem, size = 0x2000, scoped, tag = 'input window, operand 5, single buffered']
    #allocation13 [shape = 's32[1]{0}', space=sflag, size = 0x4, scoped, tag = 'scoped memory for tpu_custom_call.1']
    #allocation14 [shape = 'u8[512]{0}', space=vmem, size = 0x400, scoped, tag = 'input window, operand 6, single buffered']
    #allocation15 [shape = 'u8[16384]{0}', space=vmem, size = 0x4000, scoped, tag = 'input window, operand 7, single buffered']
    #allocation16 [shape = 's32[1]{0}', space=sflag, size = 0x4, scoped, tag = 'scoped memory for tpu_custom_call.1']
    #allocation17 [shape = 'u8[1024]{0}', space=vmem, size = 0x400, scoped, tag = 'input window, operand 8, single buffered']
    #allocation18 [shape = 'u8[8192]{0}', space=vmem, size = 0x2000, scoped, tag = 'output window, operand 0']
    %15 = vsyncpa [#allocation4], 0
    %s16 = scalar_lea.sflag [#allocation4], 1
    %17 = vsyncpa %s16, 0
    %18 = vsyncpa [#allocation7], 0
    %19 = vsyncpa [#allocation10], 0
    %20 = vsyncpa [#allocation13], 0
    %21 = vsyncpa [#allocation16], 0
    %22 = vsyncpa [#allocation5], 0
    %s23 = scalar_lea.sflag [#allocation5], 1
    %24 = vsyncpa %s23, 0
    loop: start=0, step=1, limit=4
    $region2: #{tpu_custom_call.1} parent=1 // loop_pre_header
      _
    $region3: #{tpu_custom_call.1} parent=1 // loop_header
      %s26 = sphi 0, %s30
      %p27 = scmp.ge.s32.totalorder %s26, 4
      %s33 = sphi 0, %s45
      %s34 = sphi 0, %s41
      %s35 = sphi 0, %s33
      %s36 = sphi 0, %s34
      %s37 = sphi 0, %s35
      %s38 = sphi 0, %s36
      %s50 = sphi 0, %s52
      %s53 = sphi 0, %s50
      %s54 = sphi 0, %s53
      %s70 = sphi 0, %s54
      %s74 = sphi 0, %s74
      %s76 = sphi 0, %s74
      %s77 = sphi 0, %s76
      %s91 = sphi 0, %s77
      %s95 = sphi 0, %s95
      %s97 = sphi 0, %s95
      %s98 = sphi 0, %s97
      %s112 = sphi 0, %s98
      %s116 = sphi 0, %s116
      %s118 = sphi 0, %s116
      %s119 = sphi 0, %s118
      %s133 = sphi 0, %s119
      %s137 = sphi 0, %s137
      %s139 = sphi 0, %s137
      %s140 = sphi 0, %s139
      %s154 = sphi 0, %s140
      %s158 = sphi 0, %s158
      %s160 = sphi 0, %s158
      %s161 = sphi 0, %s160
      %s175 = sphi 0, %s161
      %s179 = sphi 0, %s179
      %s181 = sphi 0, %s179
      %s182 = sphi 0, %s181
      %s196 = sphi 0, %s182
      %s200 = sphi 0, %s200
      %s202 = sphi 0, %s200
      %s203 = sphi 0, %s202
      %s217 = sphi 0, %s203
      %s221 = sphi 0, %s221
      %s223 = sphi 0, %s221
      %s224 = sphi 0, %s223
      %s238 = sphi 0, %s224
      %s244 = sphi 0, %s246
      %s247 = sphi 0, %s244
      %s248 = sphi 0, %s247
      %s264 = sphi 0, %s248
      %s270 = sphi 0, %s272
      %s273 = sphi 0, %s270
      %s274 = sphi 0, %s273
      %s290 = sphi 0, %s274
    $region4: #{tpu_custom_call.1} parent=1 // loop_header_branch
      %29 = sbr.rel (%p27) target = $region8
    $region5: #{tpu_custom_call.1} parent=1 // loop_body
      %s31 = ssub.s32 %s26, 1
      %s32 = ssub.s32 %s26, 2
      %s39 = sadd.s32 1, %s34
      %p40 = scmp.ge.s32.totalorder %s39, 1
      %s41 = scalar_select %p40, 0, %s39
      %s42 = sadd.s32 1, %s33
      %s43 = scalar_select %p40, %s42, %s33
      %p44 = scmp.ge.s32.totalorder %s43, 2
      %s45 = scalar_select %p44, 0, %s43
      %s46 = ssub.s32 %s33, %s45
      %s47 = ssub.s32 %s34, %s41
      %s48 = sor.u32 %s46, %s47
      %p49 = scmp.eq.s32.totalorder %s48, 0
      %s51 = sadd.s32 %s50, 1
      %s52 = scalar_select %p49, %s50, %s51
      %p55 = pneg %p49
      %p56 = scmp.eq.s32.totalorder %s26, 1
      %p57 = por %p55, %p56
      %p58 = scmp.ne.s32.totalorder %s50, %s53
      %p59 = scmp.eq.s32.totalorder %s26, 0
      %p60 = por %p58, %p59
      %p61 = scmp.ne.s32.totalorder %s50, %s53
      %p62 = scmp.eq.s32.totalorder %s31, 1
      %p63 = por %p61, %p62
      %p64 = scmp.ne.s32.totalorder %s53, %s54
      %p65 = scmp.eq.s32.totalorder %s31, 0
      %p66 = por %p64, %p65
      %p67 = scmp.ne.s32.totalorder %s53, %s54
      %p68 = scmp.eq.s32.totalorder %s32, 1
      %p69 = por %p67, %p68
      %p71 = scmp.ne.s32.totalorder %s54, %s70
      %p72 = scmp.eq.s32.totalorder %s32, 0
      %p73 = por %p71, %p72
      %s75 = sadd.s32 %s74, 1
      %p78 = scmp.eq.s32.totalorder %s26, 1
      %p79 = scmp.ne.s32.totalorder %s74, %s76
      %p80 = scmp.eq.s32.totalorder %s26, 0
      %p81 = por %p79, %p80
      %p82 = scmp.ne.s32.totalorder %s74, %s76
      %p83 = scmp.eq.s32.totalorder %s31, 1
      %p84 = por %p82, %p83
      %p85 = scmp.ne.s32.totalorder %s76, %s77
      %p86 = scmp.eq.s32.totalorder %s31, 0
      %p87 = por %p85, %p86
      %p88 = scmp.ne.s32.totalorder %s76, %s77
      %p89 = scmp.eq.s32.totalorder %s32, 1
      %p90 = por %p88, %p89
      %p92 = scmp.ne.s32.totalorder %s77, %s91
      %p93 = scmp.eq.s32.totalorder %s32, 0
      %p94 = por %p92, %p93
      %s96 = sadd.s32 %s95, 1
      %p99 = scmp.eq.s32.totalorder %s26, 1
      %p100 = scmp.ne.s32.totalorder %s95, %s97
      %p101 = scmp.eq.s32.totalorder %s26, 0
      %p102 = por %p100, %p101
      %p103 = scmp.ne.s32.totalorder %s95, %s97
      %p104 = scmp.eq.s32.totalorder %s31, 1
      %p105 = por %p103, %p104
      %p106 = scmp.ne.s32.totalorder %s97, %s98
      %p107 = scmp.eq.s32.totalorder %s31, 0
      %p108 = por %p106, %p107
      %p109 = scmp.ne.s32.totalorder %s97, %s98
      %p110 = scmp.eq.s32.totalorder %s32, 1
      %p111 = por %p109, %p110
      %p113 = scmp.ne.s32.totalorder %s98, %s112
      %p114 = scmp.eq.s32.totalorder %s32, 0
      %p115 = por %p113, %p114
      %s117 = sadd.s32 %s116, 1
      %p120 = scmp.eq.s32.totalorder %s26, 1
      %p121 = scmp.ne.s32.totalorder %s116, %s118
      %p122 = scmp.eq.s32.totalorder %s26, 0
      %p123 = por %p121, %p122
      %p124 = scmp.ne.s32.totalorder %s116, %s118
      %p125 = scmp.eq.s32.totalorder %s31, 1
      %p126 = por %p124, %p125
      %p127 = scmp.ne.s32.totalorder %s118, %s119
      %p128 = scmp.eq.s32.totalorder %s31, 0
      %p129 = por %p127, %p128
      %p130 = scmp.ne.s32.totalorder %s118, %s119
      %p131 = scmp.eq.s32.totalorder %s32, 1
      %p132 = por %p130, %p131
      %p134 = scmp.ne.s32.totalorder %s119, %s133
      %p135 = scmp.eq.s32.totalorder %s32, 0
      %p136 = por %p134, %p135
      %s138 = sadd.s32 %s137, 1
      %p141 = scmp.eq.s32.totalorder %s26, 1
      %p142 = scmp.ne.s32.totalorder %s137, %s139
      %p143 = scmp.eq.s32.totalorder %s26, 0
      %p144 = por %p142, %p143
      %p145 = scmp.ne.s32.totalorder %s137, %s139
      %p146 = scmp.eq.s32.totalorder %s31, 1
      %p147 = por %p145, %p146
      %p148 = scmp.ne.s32.totalorder %s139, %s140
      %p149 = scmp.eq.s32.totalorder %s31, 0
      %p150 = por %p148, %p149
      %p151 = scmp.ne.s32.totalorder %s139, %s140
      %p152 = scmp.eq.s32.totalorder %s32, 1
      %p153 = por %p151, %p152
      %p155 = scmp.ne.s32.totalorder %s140, %s154
      %p156 = scmp.eq.s32.totalorder %s32, 0
      %p157 = por %p155, %p156
      %s159 = sadd.s32 %s158, 1
      %p162 = scmp.eq.s32.totalorder %s26, 1
      %p163 = scmp.ne.s32.totalorder %s158, %s160
      %p164 = scmp.eq.s32.totalorder %s26, 0
      %p165 = por %p163, %p164
      %p166 = scmp.ne.s32.totalorder %s158, %s160
      %p167 = scmp.eq.s32.totalorder %s31, 1
      %p168 = por %p166, %p167
      %p169 = scmp.ne.s32.totalorder %s160, %s161
      %p170 = scmp.eq.s32.totalorder %s31, 0
      %p171 = por %p169, %p170
      %p172 = scmp.ne.s32.totalorder %s160, %s161
      %p173 = scmp.eq.s32.totalorder %s32, 1
      %p174 = por %p172, %p173
      %p176 = scmp.ne.s32.totalorder %s161, %s175
      %p177 = scmp.eq.s32.totalorder %s32, 0
      %p178 = por %p176, %p177
      %s180 = sadd.s32 %s179, 1
      %p183 = scmp.eq.s32.totalorder %s26, 1
      %p184 = scmp.ne.s32.totalorder %s179, %s181
      %p185 = scmp.eq.s32.totalorder %s26, 0
      %p186 = por %p184, %p185
      %p187 = scmp.ne.s32.totalorder %s179, %s181
      %p188 = scmp.eq.s32.totalorder %s31, 1
      %p189 = por %p187, %p188
      %p190 = scmp.ne.s32.totalorder %s181, %s182
      %p191 = scmp.eq.s32.totalorder %s31, 0
      %p192 = por %p190, %p191
      %p193 = scmp.ne.s32.totalorder %s181, %s182
      %p194 = scmp.eq.s32.totalorder %s32, 1
      %p195 = por %p193, %p194
      %p197 = scmp.ne.s32.totalorder %s182, %s196
      %p198 = scmp.eq.s32.totalorder %s32, 0
      %p199 = por %p197, %p198
      %s201 = sadd.s32 %s200, 1
      %p204 = scmp.eq.s32.totalorder %s26, 1
      %p205 = scmp.ne.s32.totalorder %s200, %s202
      %p206 = scmp.eq.s32.totalorder %s26, 0
      %p207 = por %p205, %p206
      %p208 = scmp.ne.s32.totalorder %s200, %s202
      %p209 = scmp.eq.s32.totalorder %s31, 1
      %p210 = por %p208, %p209
      %p211 = scmp.ne.s32.totalorder %s202, %s203
      %p212 = scmp.eq.s32.totalorder %s31, 0
      %p213 = por %p211, %p212
      %p214 = scmp.ne.s32.totalorder %s202, %s203
      %p215 = scmp.eq.s32.totalorder %s32, 1
      %p216 = por %p214, %p215
      %p218 = scmp.ne.s32.totalorder %s203, %s217
      %p219 = scmp.eq.s32.totalorder %s32, 0
      %p220 = por %p218, %p219
      %s222 = sadd.s32 %s221, 1
      %p225 = scmp.eq.s32.totalorder %s26, 1
      %p226 = scmp.ne.s32.totalorder %s221, %s223
      %p227 = scmp.eq.s32.totalorder %s26, 0
      %p228 = por %p226, %p227
      %p229 = scmp.ne.s32.totalorder %s221, %s223
      %p230 = scmp.eq.s32.totalorder %s31, 1
      %p231 = por %p229, %p230
      %p232 = scmp.ne.s32.totalorder %s223, %s224
      %p233 = scmp.eq.s32.totalorder %s31, 0
      %p234 = por %p232, %p233
      %p235 = scmp.ne.s32.totalorder %s223, %s224
      %p236 = scmp.eq.s32.totalorder %s32, 1
      %p237 = por %p235, %p236
      %p239 = scmp.ne.s32.totalorder %s224, %s238
      %p240 = scmp.eq.s32.totalorder %s32, 0
      %p241 = por %p239, %p240
      %s242 = ssub.s32 %s33, %s45
      %p243 = scmp.eq.s32.totalorder %s242, 0
      %s245 = sadd.s32 %s244, 1
      %s246 = scalar_select %p243, %s244, %s245
      %p249 = pneg %p243
      %p250 = scmp.eq.s32.totalorder %s26, 1
      %p251 = por %p249, %p250
      %p252 = scmp.ne.s32.totalorder %s244, %s247
      %p253 = scmp.eq.s32.totalorder %s26, 0
      %p254 = por %p252, %p253
      %p255 = scmp.ne.s32.totalorder %s244, %s247
      %p256 = scmp.eq.s32.totalorder %s31, 1
      %p257 = por %p255, %p256
      %p258 = scmp.ne.s32.totalorder %s247, %s248
      %p259 = scmp.eq.s32.totalorder %s31, 0
      %p260 = por %p258, %p259
      %p261 = scmp.ne.s32.totalorder %s247, %s248
      %p262 = scmp.eq.s32.totalorder %s32, 1
      %p263 = por %p261, %p262
      %p265 = scmp.ne.s32.totalorder %s248, %s264
      %p266 = scmp.eq.s32.totalorder %s32, 0
      %p267 = por %p265, %p266
      %s268 = ssub.s32 %s33, %s45
      %p269 = scmp.eq.s32.totalorder %s268, 0
      %s271 = sadd.s32 %s270, 1
      %s272 = scalar_select %p269, %s270, %s271
      %p275 = pneg %p269
      %p276 = scmp.eq.s32.totalorder %s26, 1
      %p277 = por %p275, %p276
      %p278 = scmp.ne.s32.totalorder %s270, %s273
      %p279 = scmp.eq.s32.totalorder %s26, 0
      %p280 = por %p278, %p279
      %p281 = scmp.ne.s32.totalorder %s270, %s273
      %p282 = scmp.eq.s32.totalorder %s31, 1
      %p283 = por %p281, %p282
      %p284 = scmp.ne.s32.totalorder %s273, %s274
      %p285 = scmp.eq.s32.totalorder %s31, 0
      %p286 = por %p284, %p285
      %p287 = scmp.ne.s32.totalorder %s273, %s274
      %p288 = scmp.eq.s32.totalorder %s32, 1
      %p289 = por %p287, %p288
      %p291 = scmp.ne.s32.totalorder %s274, %s290
      %p292 = scmp.eq.s32.totalorder %s32, 0
      %p293 = por %p291, %p292
      %p294 = scmp.le.s32.totalorder 1, %s26
      %p295 = scmp.lt.s32.totalorder %s26, 3
      %p296 = pnand %p294, %p295
      %p297 = pneg %p296
      // Predicated region
      $region9: #{tpu_custom_call.1} parent=5 // pred_check
        _
      $region10: #{tpu_custom_call.1} parent=5 // pred_check_branch
        %299 = sbr.rel (%p296) target = $region12
      $region11: #{tpu_custom_call.1} parent=5 // pred_region
        %s300 = ssub.s32 %s26, 1
        // Predicated region
        $region13: #{tpu_custom_call.1} parent=11 // pred_check
          %p301 = pneg %p87
        $region14: #{tpu_custom_call.1} parent=11 // pred_check_branch
          %303 = sbr.rel (%p301) target = $region16
        $region15: #{tpu_custom_call.1} parent=11 // pred_region
          %s305 = ssub.s32 256, 256
          %306 = vsyncadd [#allocation7], %s305
          %s307 = sshll.u32 [#allocation6], 4
          %s308 = int_to_ptr.vmem [resolvable:$true] %s307
          %313 = dma.hbm_to_vmem [thread:$0]  %s1, 256, %s308, [#allocation7], 64, 64, 4
        $region16: #{tpu_custom_call.1} parent=11 // pred_fallthru
          _
        // Predicated region
        $region17: #{tpu_custom_call.1} parent=11 // pred_check
          %p314 = pneg %p108
        $region18: #{tpu_custom_call.1} parent=11 // pred_check_branch
          %316 = sbr.rel (%p314) target = $region20
        $region19: #{tpu_custom_call.1} parent=11 // pred_region
          %s318 = ssub.s32 16, 16
          %319 = vsyncadd [#allocation7], %s318
          %s321 = sshll.u32 [#allocation8], 4
          %s322 = int_to_ptr.vmem [resolvable:$true] %s321
          %324 = dma.hbm_to_vmem [thread:$0]  %s2, 16, %s322, [#allocation7]
        $region20: #{tpu_custom_call.1} parent=11 // pred_fallthru
          _
        // Predicated region
        $region21: #{tpu_custom_call.1} parent=11 // pred_check
          %p325 = pneg %p129
        $region22: #{tpu_custom_call.1} parent=11 // pred_check_branch
          %327 = sbr.rel (%p325) target = $region24
        $region23: #{tpu_custom_call.1} parent=11 // pred_region
          %s329 = ssub.s32 256, 256
          %330 = vsyncadd [#allocation10], %s329
          %s331 = sshll.u32 [#allocation9], 4
          %s332 = int_to_ptr.vmem [resolvable:$true] %s331
          %337 = dma.hbm_to_vmem [thread:$0]  %s3, 256, %s332, [#allocation10], 64, 64, 4
        $region24: #{tpu_custom_call.1} parent=11 // pred_fallthru
          _
        // Predicated region
        $region25: #{tpu_custom_call.1} parent=11 // pred_check
          %p338 = pneg %p150
        $region26: #{tpu_custom_call.1} parent=11 // pred_check_branch
          %340 = sbr.rel (%p338) target = $region28
        $region27: #{tpu_custom_call.1} parent=11 // pred_region
          %s342 = ssub.s32 16, 16
          %343 = vsyncadd [#allocation10], %s342
          %s345 = sshll.u32 [#allocation11], 4
          %s346 = int_to_ptr.vmem [resolvable:$true] %s345
          %348 = dma.hbm_to_vmem [thread:$0]  %s4, 16, %s346, [#allocation10]
        $region28: #{tpu_custom_call.1} parent=11 // pred_fallthru
          _
        // Predicated region
        $region29: #{tpu_custom_call.1} parent=11 // pred_check
          %p349 = pneg %p171
        $region30: #{tpu_custom_call.1} parent=11 // pred_check_branch
          %351 = sbr.rel (%p349) target = $region32
        $region31: #{tpu_custom_call.1} parent=11 // pred_region
          %s353 = ssub.s32 256, 256
          %354 = vsyncadd [#allocation13], %s353
          %s355 = sshll.u32 [#allocation12], 4
          %s356 = int_to_ptr.vmem [resolvable:$true] %s355
          %361 = dma.hbm_to_vmem [thread:$0]  %s5, 256, %s356, [#allocation13], 64, 64, 4
        $region32: #{tpu_custom_call.1} parent=11 // pred_fallthru
          _
        // Predicated region
        $region33: #{tpu_custom_call.1} parent=11 // pred_check
          %p362 = pneg %p192
        $region34: #{tpu_custom_call.1} parent=11 // pred_check_branch
          %364 = sbr.rel (%p362) target = $region36
        $region35: #{tpu_custom_call.1} parent=11 // pred_region
          %s366 = ssub.s32 16, 16
          %367 = vsyncadd [#allocation13], %s366
          %s369 = sshll.u32 [#allocation14], 4
          %s370 = int_to_ptr.vmem [resolvable:$true] %s369
          %372 = dma.hbm_to_vmem [thread:$0]  %s6, 16, %s370, [#allocation13]
        $region36: #{tpu_custom_call.1} parent=11 // pred_fallthru
          _
        // Predicated region
        $region37: #{tpu_custom_call.1} parent=11 // pred_check
          %p373 = pneg %p213
        $region38: #{tpu_custom_call.1} parent=11 // pred_check_branch
          %375 = sbr.rel (%p373) target = $region40
        $region39: #{tpu_custom_call.1} parent=11 // pred_region
          %s377 = ssub.s32 512, 512
          %378 = vsyncadd [#allocation16], %s377
          %s379 = sshll.u32 [#allocation15], 4
          %s380 = int_to_ptr.vmem [resolvable:$true] %s379
          %385 = dma.hbm_to_vmem [thread:$0]  %s7, 512, %s380, [#allocation16], 128, 128, 8
        $region40: #{tpu_custom_call.1} parent=11 // pred_fallthru
          _
        // Predicated region
        $region41: #{tpu_custom_call.1} parent=11 // pred_check
          %p386 = pneg %p234
        $region42: #{tpu_custom_call.1} parent=11 // pred_check_branch
          %388 = sbr.rel (%p386) target = $region44
        $region43: #{tpu_custom_call.1} parent=11 // pred_region
          %s390 = ssub.s32 32, 32
          %391 = vsyncadd [#allocation16], %s390
          %s393 = sshll.u32 [#allocation17], 4
          %s394 = int_to_ptr.vmem [resolvable:$true] %s393
          %396 = dma.hbm_to_vmem [thread:$0]  %s8, 32, %s394, [#allocation16]
        $region44: #{tpu_custom_call.1} parent=11 // pred_fallthru
          _
      $region12: #{tpu_custom_call.1} parent=5 // pred_fallthru
        _
      %p397 = scmp.lt.s32.totalorder %s26, 2
      // Predicated region
      $region45: #{tpu_custom_call.1} parent=5 // pred_check
        %p398 = pneg %p397
      $region46: #{tpu_custom_call.1} parent=5 // pred_check_branch
        %400 = sbr.rel (%p398) target = $region48
      $region47: #{tpu_custom_call.1} parent=5 // pred_region
        // Predicated region
        $region49: #{tpu_custom_call.1} parent=47 // pred_check
          %p401 = pneg %p60
        $region50: #{tpu_custom_call.1} parent=47 // pred_check_branch
          %403 = sbr.rel (%p401) target = $region52
        $region51: #{tpu_custom_call.1} parent=47 // pred_region
          %s404 = sand.u32 %s50, 1
          %s405 = scalar_lea.sflag [#allocation4], %s404
          %s406 = sand.u32 %s50, 1
          %s407 = smul.addr %s406, 128
          %s408 = scalar_lea.vmem [#allocation3], %s407
          %s409 = smul.u32 8, %s33
          %s410 = smul.u32 4, %s34
          %s412 = ssub.s32 2048, 2048
          %413 = vsyncadd %s405, %s412
          %s414 = smul.addr %s409, 4
          %s415 = sadd.s32 %s410, %s414
          %s416 = smul.addr %s415, 64
          %s417 = scalar_lea.hbm %s0, %s416
          %s418 = sshll.u32 %s408, 4
          %s419 = int_to_ptr.vmem [resolvable:$true] %s418
          %424 = dma.hbm_to_vmem [thread:$0]  %s417, 2048, %s419, %s405, 64, 64, 4
        $region52: #{tpu_custom_call.1} parent=47 // pred_fallthru
          _
        // Predicated region
        $region53: #{tpu_custom_call.1} parent=47 // pred_check
          %p425 = pneg %p254
        $region54: #{tpu_custom_call.1} parent=47 // pred_check_branch
          %427 = sbr.rel (%p425) target = $region56
        $region55: #{tpu_custom_call.1} parent=47 // pred_region
          %p428 = scmp.lt.s32.totalorder %s33, 1
          %s429 = scalar_select %p428, %s33, 1
          %s430 = smul.addr %s429, 8
          %s431 = scalar_lea.vmem %s9, %s430
        $region56: #{tpu_custom_call.1} parent=47 // pred_fallthru
          _
      $region48: #{tpu_custom_call.1} parent=5 // pred_fallthru
        _
      %p432 = scmp.le.s32.totalorder 1, %s26
      %p433 = scmp.lt.s32.totalorder %s26, 3
      %p434 = pnand %p432, %p433
      %p435 = pneg %p434
      // Predicated region
      $region57: #{tpu_custom_call.1} parent=5 // pred_check
        _
      $region58: #{tpu_custom_call.1} parent=5 // pred_check_branch
        %437 = sbr.rel (%p434) target = $region60
      $region59: #{tpu_custom_call.1} parent=5 // pred_region
        %s438 = ssub.s32 %s26, 1
        %s439 = sand.u32 %s53, 1
        %s440 = scalar_lea.sflag [#allocation4], %s439
        %s441 = sand.u32 %s53, 1
        %s442 = smul.addr %s441, 128
        %s443 = scalar_lea.vmem [#allocation3], %s442
        // Predicated region
        $region61: #{tpu_custom_call.1} parent=59 // pred_check
          %p444 = pneg %p66
        $region62: #{tpu_custom_call.1} parent=59 // pred_check_branch
          %446 = sbr.rel (%p444) target = $region64
        $region63: #{tpu_custom_call.1} parent=59 // pred_region
          %447 = dma.done %s440, 2048
        $region64: #{tpu_custom_call.1} parent=59 // pred_fallthru
          _
        // Predicated region
        $region65: #{tpu_custom_call.1} parent=59 // pred_check
          %p448 = pneg %p87
        $region66: #{tpu_custom_call.1} parent=59 // pred_check_branch
          %450 = sbr.rel (%p448) target = $region68
        $region67: #{tpu_custom_call.1} parent=59 // pred_region
          %451 = dma.done [#allocation7], 256
        $region68: #{tpu_custom_call.1} parent=59 // pred_fallthru
          _
        // Predicated region
        $region69: #{tpu_custom_call.1} parent=59 // pred_check
          %p452 = pneg %p108
        $region70: #{tpu_custom_call.1} parent=59 // pred_check_branch
          %454 = sbr.rel (%p452) target = $region72
        $region71: #{tpu_custom_call.1} parent=59 // pred_region
          %455 = dma.done [#allocation7], 16
        $region72: #{tpu_custom_call.1} parent=59 // pred_fallthru
          _
        // Predicated region
        $region73: #{tpu_custom_call.1} parent=59 // pred_check
          %p456 = pneg %p129
        $region74: #{tpu_custom_call.1} parent=59 // pred_check_branch
          %458 = sbr.rel (%p456) target = $region76
        $region75: #{tpu_custom_call.1} parent=59 // pred_region
          %459 = dma.done [#allocation10], 256
        $region76: #{tpu_custom_call.1} parent=59 // pred_fallthru
          _
        // Predicated region
        $region77: #{tpu_custom_call.1} parent=59 // pred_check
          %p460 = pneg %p150
        $region78: #{tpu_custom_call.1} parent=59 // pred_check_branch
          %462 = sbr.rel (%p460) target = $region80
        $region79: #{tpu_custom_call.1} parent=59 // pred_region
          %463 = dma.done [#allocation10], 16
        $region80: #{tpu_custom_call.1} parent=59 // pred_fallthru
          _
        // Predicated region
        $region81: #{tpu_custom_call.1} parent=59 // pred_check
          %p464 = pneg %p171
        $region82: #{tpu_custom_call.1} parent=59 // pred_check_branch
          %466 = sbr.rel (%p464) target = $region84
        $region83: #{tpu_custom_call.1} parent=59 // pred_region
          %467 = dma.done [#allocation13], 256
        $region84: #{tpu_custom_call.1} parent=59 // pred_fallthru
          _
        // Predicated region
        $region85: #{tpu_custom_call.1} parent=59 // pred_check
          %p468 = pneg %p192
        $region86: #{tpu_custom_call.1} parent=59 // pred_check_branch
          %470 = sbr.rel (%p468) target = $region88
        $region87: #{tpu_custom_call.1} parent=59 // pred_region
          %471 = dma.done [#allocation13], 16
        $region88: #{tpu_custom_call.1} parent=59 // pred_fallthru
          _
        // Predicated region
        $region89: #{tpu_custom_call.1} parent=59 // pred_check
          %p472 = pneg %p213
        $region90: #{tpu_custom_call.1} parent=59 // pred_check_branch
          %474 = sbr.rel (%p472) target = $region92
        $region91: #{tpu_custom_call.1} parent=59 // pred_region
          %475 = dma.done [#allocation16], 512
        $region92: #{tpu_custom_call.1} parent=59 // pred_fallthru
          _
        // Predicated region
        $region93: #{tpu_custom_call.1} parent=59 // pred_check
          %p476 = pneg %p234
        $region94: #{tpu_custom_call.1} parent=59 // pred_check_branch
          %478 = sbr.rel (%p476) target = $region96
        $region95: #{tpu_custom_call.1} parent=59 // pred_region
          %479 = dma.done [#allocation16], 32
        $region96: #{tpu_custom_call.1} parent=59 // pred_fallthru
          _
        %s480 = sand.u32 %s53, 1
        %s481 = scalar_lea.sflag [#allocation4], %s480
        %s482 = sand.u32 %s53, 1
        %s483 = smul.addr %s482, 128
        %s484 = scalar_lea.vmem [#allocation3], %s483
        %p485 = pneg %p66
        %p486 = pneg %p63
        %p487 = pneg %p87
        %p488 = pneg %p84
        %p489 = pneg %p108
        %p490 = pneg %p105
        %p491 = pneg %p129
        %p492 = pneg %p126
        %p493 = pneg %p150
        %p494 = pneg %p147
        %p495 = pneg %p171
        %p496 = pneg %p168
        %p497 = pneg %p192
        %p498 = pneg %p189
        %p499 = pneg %p213
        %p500 = pneg %p210
        %p501 = pneg %p234
        %p502 = pneg %p231
        %p503 = scmp.lt.s32.totalorder %s35, 1
        %s504 = scalar_select %p503, %s35, 1
        %s505 = smul.addr %s504, 8
        %s506 = scalar_lea.vmem %s9, %s505
        %p507 = pneg %p260
        %p508 = pneg %p257
        %p509 = pneg %p286
        %p510 = pneg %p283
        %s511 = sand.u32 %s273, 1
        %s512 = scalar_lea.sflag [#allocation5], %s511
        %s513 = sand.u32 %s273, 1
        %s514 = smul.addr %s513, 8
        %s515 = scalar_lea.vmem [#allocation18], %s514
        %s516 = smul.u32 8, %s35
        %s517 = smul.u32 4, %s36
        %p518 = scmp.lt.s32.totalorder %s35, 1
        %s519 = scalar_select %p518, %s35, 1
        %s520 = smul.addr %s519, 8
        %s521 = scalar_lea.vmem %s9, %s520
        %p523 = scmp.eq.s32.totalorder %s36, 0
        // Predicated region
        $region97: #{tpu_custom_call.1} parent=59 // pred_check
          %p524 = pneg %p523
        $region98: #{tpu_custom_call.1} parent=59 // pred_check_branch
          %526 = sbr.rel (%p524) target = $region100
        $region99: #{tpu_custom_call.1} parent=59 // pred_region
          %vm527 = vcmask 261120
          %528 = vst.msk [vmem:[#allocation2] sm:$0xff] %vm527, 0.0
        $region100: #{tpu_custom_call.1} parent=59 // pred_fallthru
          _
        %v529 = vld [vmem:[%s443] sm:$0xf]
        %v530 = vld [vmem:[%s443 + $0x4] sm:$0xf]
        %v531 = vld [vmem:[%s443 + $0x8] sm:$0xf]
        %v532 = vld [vmem:[%s443 + $0xc] sm:$0xf]
        %v533 = vld [vmem:[%s443 + $0x10] sm:$0xf]
        %v534 = vld [vmem:[%s443 + $0x14] sm:$0xf]
        %v535 = vld [vmem:[%s443 + $0x18] sm:$0xf]
        %v536 = vld [vmem:[%s443 + $0x1c] sm:$0xf]
        %v537 = vld [vmem:[%s443 + $0x20] sm:$0xf]
        %v538 = vld [vmem:[%s443 + $0x24] sm:$0xf]
        %v539 = vld [vmem:[%s443 + $0x28] sm:$0xf]
        %v540 = vld [vmem:[%s443 + $0x2c] sm:$0xf]
        %v541 = vld [vmem:[%s443 + $0x30] sm:$0xf]
        %v542 = vld [vmem:[%s443 + $0x34] sm:$0xf]
        %v543 = vld [vmem:[%s443 + $0x38] sm:$0xf]
        %v544 = vld [vmem:[%s443 + $0x3c] sm:$0xf]
        %v545 = vld [vmem:[%s443 + $0x40] sm:$0xf]
        %v546 = vld [vmem:[%s443 + $0x44] sm:$0xf]
        %v547 = vld [vmem:[%s443 + $0x48] sm:$0xf]
        %v548 = vld [vmem:[%s443 + $0x4c] sm:$0xf]
        %v549 = vld [vmem:[%s443 + $0x50] sm:$0xf]
        %v550 = vld [vmem:[%s443 + $0x54] sm:$0xf]
        %v551 = vld [vmem:[%s443 + $0x58] sm:$0xf]
        %v552 = vld [vmem:[%s443 + $0x5c] sm:$0xf]
        %v553 = vld [vmem:[%s443 + $0x60] sm:$0xf]
        %v554 = vld [vmem:[%s443 + $0x64] sm:$0xf]
        %v555 = vld [vmem:[%s443 + $0x68] sm:$0xf]
        %v556 = vld [vmem:[%s443 + $0x6c] sm:$0xf]
        %v557 = vld [vmem:[%s443 + $0x70] sm:$0xf]
        %v558 = vld [vmem:[%s443 + $0x74] sm:$0xf]
        %v559 = vld [vmem:[%s443 + $0x78] sm:$0xf]
        %v560 = vld [vmem:[%s443 + $0x7c] sm:$0xf]
        %v561 = vld [vmem:[#allocation6] sm:$0xf]
        %v562 = vld [vmem:[#allocation6 + $0x4] sm:$0xf]
        %v563 = vld [vmem:[#allocation6 + $0x8] sm:$0xf]
        %v564 = vld [vmem:[#allocation6 + $0xc] sm:$0xf]
        %v565 = vld [vmem:[#allocation8] sm:$0x1]
        %v567 = vlaneseq
        %v568 = vshrl.u32 %v567, 7
        %v569 = vsub.s32 0, %v568
        %v570 = vrot.slane %v565, %v569
        %v604 = vunpack.c.l.b16 %v529
        %v605 = vunpack.c.l.b16 %v530
        %v606 = vunpack.c.l.b16 %v531
        %v607 = vunpack.c.l.b16 %v532
        %v608 = vunpack.c.l.b16 %v533
        %v609 = vunpack.c.l.b16 %v534
        %v610 = vunpack.c.l.b16 %v535
        %v611 = vunpack.c.l.b16 %v536
        %v612 = vunpack.c.l.b16 %v537
        %v613 = vunpack.c.l.b16 %v538
        %v614 = vunpack.c.l.b16 %v539
        %v615 = vunpack.c.l.b16 %v540
        %v616 = vunpack.c.l.b16 %v541
        %v617 = vunpack.c.l.b16 %v542
        %v618 = vunpack.c.l.b16 %v543
        %v619 = vunpack.c.l.b16 %v544
        %v620 = vunpack.c.l.b16 %v545
        %v621 = vunpack.c.l.b16 %v546
        %v622 = vunpack.c.l.b16 %v547
        %v623 = vunpack.c.l.b16 %v548
        %v624 = vunpack.c.l.b16 %v549
        %v625 = vunpack.c.l.b16 %v550
        %v626 = vunpack.c.l.b16 %v551
        %v627 = vunpack.c.l.b16 %v552
        %v628 = vunpack.c.l.b16 %v553
        %v629 = vunpack.c.l.b16 %v554
        %v630 = vunpack.c.l.b16 %v555
        %v631 = vunpack.c.l.b16 %v556
        %v632 = vunpack.c.l.b16 %v557
        %v633 = vunpack.c.l.b16 %v558
        %v634 = vunpack.c.l.b16 %v559
        %v635 = vunpack.c.l.b16 %v560
        %v636 = vpack.c.b16 %v605, %v604
        %v637 = vpack.c.b16 %v607, %v606
        %v638 = vpack.c.b16 %v609, %v608
        %v639 = vpack.c.b16 %v611, %v610
        %v640 = vpack.c.b16 %v613, %v612
        %v641 = vpack.c.b16 %v615, %v614
        %v642 = vpack.c.b16 %v617, %v616
        %v643 = vpack.c.b16 %v619, %v618
        %v644 = vpack.c.b16 %v621, %v620
        %v645 = vpack.c.b16 %v623, %v622
        %v646 = vpack.c.b16 %v625, %v624
        %v647 = vpack.c.b16 %v627, %v626
        %v648 = vpack.c.b16 %v629, %v628
        %v649 = vpack.c.b16 %v631, %v630
        %v650 = vpack.c.b16 %v633, %v632
        %v651 = vpack.c.b16 %v635, %v634
        %v656 = vunpack.c.l.b16 %v561
        %v657 = vunpack.c.l.b16 %v562
        %v658 = vunpack.c.l.b16 %v563
        %v659 = vunpack.c.l.b16 %v564
        %v660 = vpack.c.b16 %v657, %v656
        %v661 = vpack.c.b16 %v659, %v658
        %vm664 = vcmask 261120
        %v666 = vsel %vm664, %v636, 0
        %v669 = vsel %vm664, %v637, 0
        %v672 = vsel %vm664, %v638, 0
        %v675 = vsel %vm664, %v639, 0
        %v678 = vsel %vm664, %v640, 0
        %v681 = vsel %vm664, %v641, 0
        %v684 = vsel %vm664, %v642, 0
        %v687 = vsel %vm664, %v643, 0
        %v690 = vsel %vm664, %v644, 0
        %v693 = vsel %vm664, %v645, 0
        %v696 = vsel %vm664, %v646, 0
        %v699 = vsel %vm664, %v647, 0
        %v702 = vsel %vm664, %v648, 0
        %v705 = vsel %vm664, %v649, 0
        %v708 = vsel %vm664, %v650, 0
        %v711 = vsel %vm664, %v651, 0
        %713 = vmatprep.subr.bf16.mxu0 0
        %714 = vmatpush1.bf16.msra.mxu0 0
        %715 = vmatprep.subr.bf16.mxu0 0
        %716 = vmatpush1.bf16.msra.mxu0 0
        %717 = vmatprep.subr.bf16.mxu0 0
        %718 = vmatpush1.bf16.msra.mxu0 0
        %719 = vmatprep.subr.bf16.mxu0 0
        %720 = vmatpush1.bf16.msra.mxu0 0
        %721 = vmatprep.subr.bf16.mxu0 0
        %722 = vmatpush1.bf16.msra.mxu0 0
        %723 = vmatprep.subr.bf16.mxu0 0
        %724 = vmatpush1.bf16.msra.mxu0 0
        %725 = vmatprep.subr.bf16.mxu0 0
        %726 = vmatpush1.bf16.msra.mxu0 %v661
        %727 = vmatprep.subr.bf16.mxu0 0
        %728 = vmatpush1.bf16.msra.mxu0 %v660
        %729 = vmatprep.subr.bf16.mxu0 0
        %730 = vmatpush2.bf16.msra.mxu0 0
        %731 = vmatprep.subr.bf16.mxu0 0
        %732 = vmatpush2.bf16.msra.mxu0 0
        %733 = vmatprep.subr.bf16.mxu0 0
        %734 = vmatpush2.bf16.msra.mxu0 0
        %735 = vmatprep.subr.bf16.mxu0 0
        %736 = vmatpush2.bf16.msra.mxu0 0
        %737 = vmatprep.subr.bf16.mxu0 0
        %738 = vmatpush2.bf16.msra.mxu0 0
        %739 = vmatprep.subr.bf16.mxu0 0
        %740 = vmatpush2.bf16.msra.mxu0 0
        %741 = vmatprep.subr.bf16.mxu0 0
        %742 = vmatpush2.bf16.msra.mxu0 0
        %743 = vmatprep.subr.bf16.mxu0 0
        %744 = vmatpush2.bf16.msra.mxu0 0
        %745 = vmatprep.mubr.bf16.mxu0 0
        %746 = vmatmul.mubr.bf16.gmra.mxu0 %v666
        %v747 = vpop.f32.mrf.mxu0
        %v748 = vadd.f32 %v570, %v747
        %v749 = vpop.f32.mrf.mxu0
        %v750 = vpop.f32.mrf.mxu0
        %v751 = vadd.f32 %v570, %v750
        %v752 = vpop.f32.mrf.mxu0
        %753 = vmatprep.mubr.bf16.mxu0 0
        %754 = vmatmul.mubr.bf16.gmra.mxu0 %v669
        %v755 = vpop.f32.mrf.mxu0
        %v756 = vadd.f32 %v570, %v755
        %v757 = vpop.f32.mrf.mxu0
        %v758 = vpop.f32.mrf.mxu0
        %v759 = vadd.f32 %v570, %v758
        %v760 = vpop.f32.mrf.mxu0
        %761 = vmatprep.mubr.bf16.mxu0 0
        %762 = vmatmul.mubr.bf16.gmra.mxu0 %v672
        %v763 = vpop.f32.mrf.mxu0
        %v764 = vadd.f32 %v570, %v763
        %v765 = vpop.f32.mrf.mxu0
        %v766 = vpop.f32.mrf.mxu0
        %v767 = vadd.f32 %v570, %v766
        %v768 = vpop.f32.mrf.mxu0
        %769 = vmatprep.mubr.bf16.mxu0 0
        %770 = vmatmul.mubr.bf16.gmra.mxu0 %v675
        %v771 = vpop.f32.mrf.mxu0
        %v772 = vadd.f32 %v570, %v771
        %v773 = vpop.f32.mrf.mxu0
        %v774 = vpop.f32.mrf.mxu0
        %v775 = vadd.f32 %v570, %v774
        %v776 = vpop.f32.mrf.mxu0
        %777 = vmatprep.mubr.bf16.mxu0 0
        %778 = vmatmul.mubr.bf16.gmra.mxu0 %v678
        %v779 = vpop.f32.mrf.mxu0
        %v780 = vadd.f32 %v570, %v779
        %v781 = vpop.f32.mrf.mxu0
        %v782 = vpop.f32.mrf.mxu0
        %v783 = vadd.f32 %v570, %v782
        %v784 = vpop.f32.mrf.mxu0
        %785 = vmatprep.mubr.bf16.mxu0 0
        %786 = vmatmul.mubr.bf16.gmra.mxu0 %v681
        %v787 = vpop.f32.mrf.mxu0
        %v788 = vadd.f32 %v570, %v787
        %v789 = vpop.f32.mrf.mxu0
        %v790 = vpop.f32.mrf.mxu0
        %v791 = vadd.f32 %v570, %v790
        %v792 = vpop.f32.mrf.mxu0
        %793 = vmatprep.mubr.bf16.mxu0 0
        %794 = vmatmul.mubr.bf16.gmra.mxu0 %v684
        %v795 = vpop.f32.mrf.mxu0
        %v796 = vadd.f32 %v570, %v795
        %v797 = vpop.f32.mrf.mxu0
        %v798 = vpop.f32.mrf.mxu0
        %v799 = vadd.f32 %v570, %v798
        %v800 = vpop.f32.mrf.mxu0
        %801 = vmatprep.mubr.bf16.mxu0 0
        %802 = vmatmul.mubr.bf16.gmra.mxu0 %v687
        %v803 = vpop.f32.mrf.mxu0
        %v804 = vadd.f32 %v570, %v803
        %v805 = vpop.f32.mrf.mxu0
        %v806 = vpop.f32.mrf.mxu0
        %v807 = vadd.f32 %v570, %v806
        %v808 = vpop.f32.mrf.mxu0
        %809 = vmatprep.mubr.bf16.mxu0 0
        %810 = vmatmul.mubr.bf16.gmra.mxu0 %v690
        %v811 = vpop.f32.mrf.mxu0
        %v812 = vadd.f32 %v570, %v811
        %v813 = vpop.f32.mrf.mxu0
        %v814 = vpop.f32.mrf.mxu0
        %v815 = vadd.f32 %v570, %v814
        %v816 = vpop.f32.mrf.mxu0
        %817 = vmatprep.mubr.bf16.mxu0 0
        %818 = vmatmul.mubr.bf16.gmra.mxu0 %v693
        %v819 = vpop.f32.mrf.mxu0
        %v820 = vadd.f32 %v570, %v819
        %v821 = vpop.f32.mrf.mxu0
        %v822 = vpop.f32.mrf.mxu0
        %v823 = vadd.f32 %v570, %v822
        %v824 = vpop.f32.mrf.mxu0
        %825 = vmatprep.mubr.bf16.mxu0 0
        %826 = vmatmul.mubr.bf16.gmra.mxu0 %v696
        %v827 = vpop.f32.mrf.mxu0
        %v828 = vadd.f32 %v570, %v827
        %v829 = vpop.f32.mrf.mxu0
        %v830 = vpop.f32.mrf.mxu0
        %v831 = vadd.f32 %v570, %v830
        %v832 = vpop.f32.mrf.mxu0
        %833 = vmatprep.mubr.bf16.mxu0 0
        %834 = vmatmul.mubr.bf16.gmra.mxu0 %v699
        %v835 = vpop.f32.mrf.mxu0
        %v836 = vadd.f32 %v570, %v835
        %v837 = vpop.f32.mrf.mxu0
        %v838 = vpop.f32.mrf.mxu0
        %v839 = vadd.f32 %v570, %v838
        %v840 = vpop.f32.mrf.mxu0
        %841 = vmatprep.mubr.bf16.mxu0 0
        %842 = vmatmul.mubr.bf16.gmra.mxu0 %v702
        %v843 = vpop.f32.mrf.mxu0
        %v844 = vadd.f32 %v570, %v843
        %v845 = vpop.f32.mrf.mxu0
        %v846 = vpop.f32.mrf.mxu0
        %v847 = vadd.f32 %v570, %v846
        %v848 = vpop.f32.mrf.mxu0
        %849 = vmatprep.mubr.bf16.mxu0 0
        %850 = vmatmul.mubr.bf16.gmra.mxu0 %v705
        %v851 = vpop.f32.mrf.mxu0
        %v852 = vadd.f32 %v570, %v851
        %v853 = vpop.f32.mrf.mxu0
        %v854 = vpop.f32.mrf.mxu0
        %v855 = vadd.f32 %v570, %v854
        %v856 = vpop.f32.mrf.mxu0
        %857 = vmatprep.mubr.bf16.mxu0 0
        %858 = vmatmul.mubr.bf16.gmra.mxu0 %v708
        %v859 = vpop.f32.mrf.mxu0
        %v860 = vadd.f32 %v570, %v859
        %v861 = vpop.f32.mrf.mxu0
        %v862 = vpop.f32.mrf.mxu0
        %v863 = vadd.f32 %v570, %v862
        %v864 = vpop.f32.mrf.mxu0
        %865 = vmatprep.mubr.bf16.mxu0 0
        %866 = vmatmul.mubr.bf16.gmra.mxu0 %v711
        %v867 = vpop.f32.mrf.mxu0
        %v868 = vadd.f32 %v570, %v867
        %v869 = vpop.f32.mrf.mxu0
        %v870 = vpop.f32.mrf.mxu0
        %v871 = vadd.f32 %v570, %v870
        %v872 = vpop.f32.mrf.mxu0
        %873 = vdwg.mxu0
        %v874 = vmax.f32 %v748, 0.0
        %v875 = vmax.f32 %v751, 0.0
        %v876 = vmax.f32 %v756, 0.0
        %v877 = vmax.f32 %v759, 0.0
        %v878 = vmax.f32 %v764, 0.0
        %v879 = vmax.f32 %v767, 0.0
        %v880 = vmax.f32 %v772, 0.0
        %v881 = vmax.f32 %v775, 0.0
        %v882 = vmax.f32 %v780, 0.0
        %v883 = vmax.f32 %v783, 0.0
        %v884 = vmax.f32 %v788, 0.0
        %v885 = vmax.f32 %v791, 0.0
        %v886 = vmax.f32 %v796, 0.0
        %v887 = vmax.f32 %v799, 0.0
        %v888 = vmax.f32 %v804, 0.0
        %v889 = vmax.f32 %v807, 0.0
        %v890 = vmax.f32 %v812, 0.0
        %v891 = vmax.f32 %v815, 0.0
        %v892 = vmax.f32 %v820, 0.0
        %v893 = vmax.f32 %v823, 0.0
        %v894 = vmax.f32 %v828, 0.0
        %v895 = vmax.f32 %v831, 0.0
        %v896 = vmax.f32 %v836, 0.0
        %v897 = vmax.f32 %v839, 0.0
        %v898 = vmax.f32 %v844, 0.0
        %v899 = vmax.f32 %v847, 0.0
        %v900 = vmax.f32 %v852, 0.0
        %v901 = vmax.f32 %v855, 0.0
        %v902 = vmax.f32 %v860, 0.0
        %v903 = vmax.f32 %v863, 0.0
        %v904 = vmax.f32 %v868, 0.0
        %v905 = vmax.f32 %v871, 0.0
        %v906 = vld [vmem:[#allocation2] sm:$0xff]
        %v907 = vsel %vm664, %v874, 0.0
        %v908 = vsel %vm664, %v875, 0.0
        %v909 = vadd.f32 %v907, %v908
        %v910 = vsel %vm664, %v876, 0.0
        %v911 = vadd.f32 %v909, %v910
        %v912 = vsel %vm664, %v877, 0.0
        %v913 = vadd.f32 %v911, %v912
        %v914 = vrot.slane %v913, 4
        %v915 = vadd.f32 %v913, %v914
        %v916 = vrot.slane %v915, 2
        %v917 = vadd.f32 %v915, %v916
        %v918 = vrot.slane %v917, 1
        %v919 = vadd.f32 %v917, %v918
        %v920 = vsel %vm664, %v878, 0.0
        %v921 = vsel %vm664, %v879, 0.0
        %v922 = vadd.f32 %v920, %v921
        %v923 = vsel %vm664, %v880, 0.0
        %v924 = vadd.f32 %v922, %v923
        %v925 = vsel %vm664, %v881, 0.0
        %v926 = vadd.f32 %v924, %v925
        %v927 = vrot.slane %v926, 4
        %v928 = vadd.f32 %v926, %v927
        %v929 = vrot.slane %v928, 2
        %v930 = vadd.f32 %v928, %v929
        %v931 = vrot.slane %v930, 1
        %v932 = vadd.f32 %v930, %v931
        %v933 = vsel %vm664, %v882, 0.0
        %v934 = vsel %vm664, %v883, 0.0
        %v935 = vadd.f32 %v933, %v934
        %v936 = vsel %vm664, %v884, 0.0
        %v937 = vadd.f32 %v935, %v936
        %v938 = vsel %vm664, %v885, 0.0
        %v939 = vadd.f32 %v937, %v938
        %v940 = vrot.slane %v939, 4
        %v941 = vadd.f32 %v939, %v940
        %v942 = vrot.slane %v941, 2
        %v943 = vadd.f32 %v941, %v942
        %v944 = vrot.slane %v943, 1
        %v945 = vadd.f32 %v943, %v944
        %v946 = vsel %vm664, %v886, 0.0
        %v947 = vsel %vm664, %v887, 0.0
        %v948 = vadd.f32 %v946, %v947
        %v949 = vsel %vm664, %v888, 0.0
        %v950 = vadd.f32 %v948, %v949
        %v951 = vsel %vm664, %v889, 0.0
        %v952 = vadd.f32 %v950, %v951
        %v953 = vrot.slane %v952, 4
        %v954 = vadd.f32 %v952, %v953
        %v955 = vrot.slane %v954, 2
        %v956 = vadd.f32 %v954, %v955
        %v957 = vrot.slane %v956, 1
        %v958 = vadd.f32 %v956, %v957
        %v959 = vsel %vm664, %v890, 0.0
        %v960 = vsel %vm664, %v891, 0.0
        %v961 = vadd.f32 %v959, %v960
        %v962 = vsel %vm664, %v892, 0.0
        %v963 = vadd.f32 %v961, %v962
        %v964 = vsel %vm664, %v893, 0.0
        %v965 = vadd.f32 %v963, %v964
        %v966 = vrot.slane %v965, 4
        %v967 = vadd.f32 %v965, %v966
        %v968 = vrot.slane %v967, 2
        %v969 = vadd.f32 %v967, %v968
        %v970 = vrot.slane %v969, 1
        %v971 = vadd.f32 %v969, %v970
        %v972 = vsel %vm664, %v894, 0.0
        %v973 = vsel %vm664, %v895, 0.0
        %v974 = vadd.f32 %v972, %v973
        %v975 = vsel %vm664, %v896, 0.0
        %v976 = vadd.f32 %v974, %v975
        %v977 = vsel %vm664, %v897, 0.0
        %v978 = vadd.f32 %v976, %v977
        %v979 = vrot.slane %v978, 4
        %v980 = vadd.f32 %v978, %v979
        %v981 = vrot.slane %v980, 2
        %v982 = vadd.f32 %v980, %v981
        %v983 = vrot.slane %v982, 1
        %v984 = vadd.f32 %v982, %v983
        %v985 = vsel %vm664, %v898, 0.0
        %v986 = vsel %vm664, %v899, 0.0
        %v987 = vadd.f32 %v985, %v986
        %v988 = vsel %vm664, %v900, 0.0
        %v989 = vadd.f32 %v987, %v988
        %v990 = vsel %vm664, %v901, 0.0
        %v991 = vadd.f32 %v989, %v990
        %v992 = vrot.slane %v991, 4
        %v993 = vadd.f32 %v991, %v992
        %v994 = vrot.slane %v993, 2
        %v995 = vadd.f32 %v993, %v994
        %v996 = vrot.slane %v995, 1
        %v997 = vadd.f32 %v995, %v996
        %v998 = vsel %vm664, %v902, 0.0
        %v999 = vsel %vm664, %v903, 0.0
        %v1000 = vadd.f32 %v998, %v999
        %v1001 = vsel %vm664, %v904, 0.0
        %v1002 = vadd.f32 %v1000, %v1001
        %v1003 = vsel %vm664, %v905, 0.0
        %v1004 = vadd.f32 %v1002, %v1003
        %v1005 = vrot.slane %v1004, 4
        %v1006 = vadd.f32 %v1004, %v1005
        %v1007 = vrot.slane %v1006, 2
        %v1008 = vadd.f32 %v1006, %v1007
        %v1009 = vrot.slane %v1008, 1
        %v1010 = vadd.f32 %v1008, %v1009
        %vm1019 = vcmask 1041409
        %v1020 = vsel %vm1019, %v932, %v919
        %vm1021 = vcmask 1042434
        %v1022 = vsel %vm1021, %v945, %v1020
        %vm1023 = vcmask 1043459
        %v1024 = vsel %vm1023, %v958, %v1022
        %vm1025 = vcmask 1044484
        %v1026 = vsel %vm1025, %v971, %v1024
        %vm1027 = vcmask 1045509
        %v1028 = vsel %vm1027, %v984, %v1026
        %vm1029 = vcmask 1046534
        %v1030 = vsel %vm1029, %v997, %v1028
        %vm1031 = vcmask 1047559
        %v1032 = vsel %vm1031, %v1010, %v1030
        %v1034 = vadd.f32 %v906, %v1032
        %1035 = vst.msk [vmem:[#allocation2] sm:$0xff] %vm664, %v1034
        // Predicated region
        $region101: #{tpu_custom_call.1} parent=59 // pred_check
          %p1036 = pneg %p523
        $region102: #{tpu_custom_call.1} parent=59 // pred_check_branch
          %1038 = sbr.rel (%p1036) target = $region104
        $region103: #{tpu_custom_call.1} parent=59 // pred_region
          %v1039 = vld [vmem:[#allocation2] sm:$0xff]
          %v1040 = vmul.f32 %v1039, 0.03125
          %v1041 = vpack.c.bf16 %v1040, %v1040
          %v1042 = vld [vmem:[#allocation9] sm:$0xf]
          %v1043 = vld [vmem:[#allocation9 + $0x4] sm:$0xf]
          %v1044 = vld [vmem:[#allocation9 + $0x8] sm:$0xf]
          %v1045 = vld [vmem:[#allocation9 + $0xc] sm:$0xf]
          %v1046 = vld [vmem:[#allocation11] sm:$0x1]
          %v1048 = vlaneseq
          %v1049 = vshrl.u32 %v1048, 7
          %v1050 = vsub.s32 0, %v1049
          %v1051 = vrot.slane %v1046, %v1050
          %v1057 = vunpack.c.l.b16 %v1042
          %v1058 = vunpack.c.l.b16 %v1043
          %v1059 = vunpack.c.l.b16 %v1044
          %v1060 = vunpack.c.l.b16 %v1045
          %v1061 = vpack.c.b16 %v1058, %v1057
          %v1062 = vpack.c.b16 %v1060, %v1059
          %v1066 = vsel %vm664, %v1041, 0
          %1068 = vmatprep.subr.bf16.mxu0 0
          %1069 = vmatpush1.bf16.msra.mxu0 0
          %1070 = vmatprep.subr.bf16.mxu0 0
          %1071 = vmatpush1.bf16.msra.mxu0 0
          %1072 = vmatprep.subr.bf16.mxu0 0
          %1073 = vmatpush1.bf16.msra.mxu0 0
          %1074 = vmatprep.subr.bf16.mxu0 0
          %1075 = vmatpush1.bf16.msra.mxu0 0
          %1076 = vmatprep.subr.bf16.mxu0 0
          %1077 = vmatpush1.bf16.msra.mxu0 0
          %1078 = vmatprep.subr.bf16.mxu0 0
          %1079 = vmatpush1.bf16.msra.mxu0 0
          %1080 = vmatprep.subr.bf16.mxu0 0
          %1081 = vmatpush1.bf16.msra.mxu0 %v1062
          %1082 = vmatprep.subr.bf16.mxu0 0
          %1083 = vmatpush1.bf16.msra.mxu0 %v1061
          %1084 = vmatprep.subr.bf16.mxu0 0
          %1085 = vmatpush2.bf16.msra.mxu0 0
          %1086 = vmatprep.subr.bf16.mxu0 0
          %1087 = vmatpush2.bf16.msra.mxu0 0
          %1088 = vmatprep.subr.bf16.mxu0 0
          %1089 = vmatpush2.bf16.msra.mxu0 0
          %1090 = vmatprep.subr.bf16.mxu0 0
          %1091 = vmatpush2.bf16.msra.mxu0 0
          %1092 = vmatprep.subr.bf16.mxu0 0
          %1093 = vmatpush2.bf16.msra.mxu0 0
          %1094 = vmatprep.subr.bf16.mxu0 0
          %1095 = vmatpush2.bf16.msra.mxu0 0
          %1096 = vmatprep.subr.bf16.mxu0 0
          %1097 = vmatpush2.bf16.msra.mxu0 0
          %1098 = vmatprep.subr.bf16.mxu0 0
          %1099 = vmatpush2.bf16.msra.mxu0 0
          %1100 = vmatprep.mubr.bf16.mxu0 0
          %1101 = vmatmul.mubr.bf16.gmra.mxu0 %v1066
          %v1102 = vpop.f32.mrf.mxu0
          %v1103 = vadd.f32 %v1051, %v1102
          %v1104 = vpop.f32.mrf.mxu0
          %v1105 = vpop.f32.mrf.mxu0
          %v1106 = vpop.f32.mrf.mxu0
          %1107 = vdwg.mxu0
          %v1108 = vpack.c.bf16 %v1103, %v1103
          %v1109 = vld [vmem:[#allocation12] sm:$0xf]
          %v1110 = vld [vmem:[#allocation12 + $0x4] sm:$0xf]
          %v1111 = vld [vmem:[#allocation12 + $0x8] sm:$0xf]
          %v1112 = vld [vmem:[#allocation12 + $0xc] sm:$0xf]
          %v1113 = vld [vmem:[#allocation14] sm:$0x1]
          %v1115 = vlaneseq
          %v1116 = vshrl.u32 %v1115, 7
          %v1117 = vsub.s32 0, %v1116
          %v1118 = vrot.slane %v1113, %v1117
          %v1124 = vunpack.c.l.b16 %v1109
          %v1125 = vunpack.c.l.b16 %v1110
          %v1126 = vunpack.c.l.b16 %v1111
          %v1127 = vunpack.c.l.b16 %v1112
          %v1128 = vpack.c.b16 %v1125, %v1124
          %v1129 = vpack.c.b16 %v1127, %v1126
          %v1133 = vsel %vm664, %v1108, 0
          %1135 = vmatprep.subr.bf16.mxu0 0
          %1136 = vmatpush1.bf16.msra.mxu0 0
          %1137 = vmatprep.subr.bf16.mxu0 0
          %1138 = vmatpush1.bf16.msra.mxu0 0
          %1139 = vmatprep.subr.bf16.mxu0 0
          %1140 = vmatpush1.bf16.msra.mxu0 0
          %1141 = vmatprep.subr.bf16.mxu0 0
          %1142 = vmatpush1.bf16.msra.mxu0 0
          %1143 = vmatprep.subr.bf16.mxu0 0
          %1144 = vmatpush1.bf16.msra.mxu0 0
          %1145 = vmatprep.subr.bf16.mxu0 0
          %1146 = vmatpush1.bf16.msra.mxu0 0
          %1147 = vmatprep.subr.bf16.mxu0 0
          %1148 = vmatpush1.bf16.msra.mxu0 %v1129
          %1149 = vmatprep.subr.bf16.mxu0 0
          %1150 = vmatpush1.bf16.msra.mxu0 %v1128
          %1151 = vmatprep.subr.bf16.mxu0 0
          %1152 = vmatpush2.bf16.msra.mxu0 0
          %1153 = vmatprep.subr.bf16.mxu0 0
          %1154 = vmatpush2.bf16.msra.mxu0 0
          %1155 = vmatprep.subr.bf16.mxu0 0
          %1156 = vmatpush2.bf16.msra.mxu0 0
          %1157 = vmatprep.subr.bf16.mxu0 0
          %1158 = vmatpush2.bf16.msra.mxu0 0
          %1159 = vmatprep.subr.bf16.mxu0 0
          %1160 = vmatpush2.bf16.msra.mxu0 0
          %1161 = vmatprep.subr.bf16.mxu0 0
          %1162 = vmatpush2.bf16.msra.mxu0 0
          %1163 = vmatprep.subr.bf16.mxu0 0
          %1164 = vmatpush2.bf16.msra.mxu0 0
          %1165 = vmatprep.subr.bf16.mxu0 0
          %1166 = vmatpush2.bf16.msra.mxu0 0
          %1167 = vmatprep.mubr.bf16.mxu0 0
          %1168 = vmatmul.mubr.bf16.gmra.mxu0 %v1133
          %v1169 = vpop.f32.mrf.mxu0
          %v1170 = vadd.f32 %v1118, %v1169
          %v1171 = vpop.f32.mrf.mxu0
          %v1172 = vpop.f32.mrf.mxu0
          %v1173 = vpop.f32.mrf.mxu0
          %1174 = vdwg.mxu0
          %v1175 = vmax.f32 %v1170, 0.0
          %v1176 = vpack.c.bf16 %v1175, %v1175
          %v1177 = vld [vmem:[#allocation15] sm:$0xff]
          %v1178 = vld [vmem:[#allocation15 + $0x8] sm:$0xff]
          %v1179 = vld [vmem:[#allocation15 + $0x10] sm:$0xff]
          %v1180 = vld [vmem:[#allocation15 + $0x18] sm:$0xff]
          %v1181 = vld [vmem:[#allocation17] sm:$0x3]
          %v1183 = vlaneseq
          %v1184 = vshrl.u32 %v1183, 7
          %v1185 = vsub.s32 0, %v1184
          %v1186 = vrot.slane %v1181, %v1185
          %v1187 = vlaneseq
          %v1188 = vshrl.u32 %v1187, 7
          %v1189 = vsub.s32 1, %v1188
          %v1190 = vrot.slane %v1181, %v1189
          %v1197 = vunpack.c.l.b16 %v1177
          %v1198 = vunpack.c.h.b16 %v1177
          %v1199 = vunpack.c.l.b16 %v1178
          %v1200 = vunpack.c.h.b16 %v1178
          %v1201 = vunpack.c.l.b16 %v1179
          %v1202 = vunpack.c.h.b16 %v1179
          %v1203 = vunpack.c.l.b16 %v1180
          %v1204 = vunpack.c.h.b16 %v1180
          %v1205 = vpack.c.b16 %v1199, %v1197
          %v1206 = vpack.c.b16 %v1200, %v1198
          %v1207 = vpack.c.b16 %v1203, %v1201
          %v1208 = vpack.c.b16 %v1204, %v1202
          %v1214 = vsel %vm664, %v1176, 0
          %1216 = vmatprep.subr.bf16.mxu0 0
          %1217 = vmatpush1.bf16.msra.mxu0 0
          %1218 = vmatprep.subr.bf16.mxu0 0
          %1219 = vmatpush1.bf16.msra.mxu0 0
          %1220 = vmatprep.subr.bf16.mxu0 0
          %1221 = vmatpush1.bf16.msra.mxu0 0
          %1222 = vmatprep.subr.bf16.mxu0 0
          %1223 = vmatpush1.bf16.msra.mxu0 0
          %1224 = vmatprep.subr.bf16.mxu0 0
          %1225 = vmatpush1.bf16.msra.mxu0 0
          %1226 = vmatprep.subr.bf16.mxu0 0
          %1227 = vmatpush1.bf16.msra.mxu0 0
          %1228 = vmatprep.subr.bf16.mxu0 %v1208
          %1229 = vmatpush1.bf16.msra.mxu0 %v1207
          %1230 = vmatprep.subr.bf16.mxu0 %v1206
          %1231 = vmatpush1.bf16.msra.mxu0 %v1205
          %1232 = vmatprep.subr.bf16.mxu0 0
          %1233 = vmatpush2.bf16.msra.mxu0 0
          %1234 = vmatprep.subr.bf16.mxu0 0
          %1235 = vmatpush2.bf16.msra.mxu0 0
          %1236 = vmatprep.subr.bf16.mxu0 0
          %1237 = vmatpush2.bf16.msra.mxu0 0
          %1238 = vmatprep.subr.bf16.mxu0 0
          %1239 = vmatpush2.bf16.msra.mxu0 0
          %1240 = vmatprep.subr.bf16.mxu0 0
          %1241 = vmatpush2.bf16.msra.mxu0 0
          %1242 = vmatprep.subr.bf16.mxu0 0
          %1243 = vmatpush2.bf16.msra.mxu0 0
          %1244 = vmatprep.subr.bf16.mxu0 0
          %1245 = vmatpush2.bf16.msra.mxu0 0
          %1246 = vmatprep.subr.bf16.mxu0 0
          %1247 = vmatpush2.bf16.msra.mxu0 0
          %1248 = vmatprep.mubr.bf16.mxu0 0
          %1249 = vmatmul.mubr.bf16.gmra.mxu0 %v1214
          %v1250 = vpop.f32.mrf.mxu0
          %v1251 = vadd.f32 %v1186, %v1250
          %v1252 = vpop.f32.mrf.mxu0
          %v1253 = vadd.f32 %v1190, %v1252
          %v1254 = vpop.f32.mrf.mxu0
          %v1255 = vpop.f32.mrf.mxu0
          %1256 = vdwg.mxu0
          %v1257 = vld [vmem:[%s521] sm:$0xff]
          %v1258 = vmul.f32 %v1253, 0.5
          %v1259 = vmul.f32 %v1258, 1.442695
          %v1260 = vpow.pop %v1259
          %v1261 = vmul.f32 %v1257, %v1260
          %v1262 = vadd.f32 %v1261, %v1251
          %1263 = vst [vmem:[%s515] sm:$0xff] %v1262
        $region104: #{tpu_custom_call.1} parent=59 // pred_fallthru
          _
        %s1264 = sand.u32 %s273, 1
        %s1265 = scalar_lea.sflag [#allocation5], %s1264
        %s1266 = sand.u32 %s273, 1
        %s1267 = smul.addr %s1266, 8
        %s1268 = scalar_lea.vmem [#allocation18], %s1267
        // Predicated region
        $region105: #{tpu_custom_call.1} parent=59 // pred_check
          %p1269 = pneg %p283
        $region106: #{tpu_custom_call.1} parent=59 // pred_check_branch
          %1271 = sbr.rel (%p1269) target = $region108
        $region107: #{tpu_custom_call.1} parent=59 // pred_region
          %s1273 = ssub.s32 128, 128
          %1274 = vsyncadd %s1265, %s1273
          %s1275 = smul.addr %s35, 128
          %s1276 = scalar_lea.hbm %s10, %s1275
          %s1278 = sshll.u32 %s1268, 4
          %s1279 = int_to_ptr.vmem [resolvable:$true] %s1278
          %1281 = dma.vmem_to_hbm [thread:$0]  %s1279, 128, %s1276, %s1265
        $region108: #{tpu_custom_call.1} parent=59 // pred_fallthru
          _
      $region60: #{tpu_custom_call.1} parent=5 // pred_fallthru
        _
      %p1282 = scmp.le.s32.totalorder 2, %s26
      // Predicated region
      $region109: #{tpu_custom_call.1} parent=5 // pred_check
        %p1283 = pneg %p1282
      $region110: #{tpu_custom_call.1} parent=5 // pred_check_branch
        %1285 = sbr.rel (%p1283) target = $region112
      $region111: #{tpu_custom_call.1} parent=5 // pred_region
        %s1286 = ssub.s32 %s26, 2
        // Predicated region
        $region113: #{tpu_custom_call.1} parent=111 // pred_check
          %p1287 = pneg %p289
        $region114: #{tpu_custom_call.1} parent=111 // pred_check_branch
          %1289 = sbr.rel (%p1287) target = $region116
        $region115: #{tpu_custom_call.1} parent=111 // pred_region
          %s1290 = sand.u32 %s274, 1
          %s1291 = scalar_lea.sflag [#allocation5], %s1290
          %s1292 = sand.u32 %s274, 1
          %s1293 = smul.addr %s1292, 8
          %s1294 = scalar_lea.vmem [#allocation18], %s1293
          %1295 = dma.done %s1291, 128
        $region116: #{tpu_custom_call.1} parent=111 // pred_fallthru
          _
      $region112: #{tpu_custom_call.1} parent=5 // pred_fallthru
        _
    $region6: #{tpu_custom_call.1} parent=1 // loop_footer
      %s30 = sadd.s32 1, %s26
    $region7: #{tpu_custom_call.1} parent=1 // loop_footer_branch
      %25 = sbr.rel target = $region3
    $region8: #{tpu_custom_call.1} parent=1 // loop_exit
      _
    %1296 = vsyncpa [#allocation4], 1
    %s1297 = scalar_lea.sflag [#allocation4], 1
    %1298 = vsyncpa %s1297, 1
    %1299 = vsyncpa [#allocation7], 1
    %1300 = vsyncpa [#allocation10], 1
    %1301 = vsyncpa [#allocation13], 1
    %1302 = vsyncpa [#allocation16], 1
    %1303 = vsyncpa [#allocation5], 1
    %s1304 = scalar_lea.sflag [#allocation5], 1
    %1305 = vsyncpa %s1304, 1

</llo_original>
